<compile_context>
chip_gen: v7x
topology: tpu7x:2x2x1
jax: 0.10.0
libtpu: 0.0.40
codegen_flags: <defaults>
</compile_context>

<pallas_src>
import functools
import math

import jax
import jax.numpy as jnp
from jax.experimental import pallas as pl
from jax.experimental.pallas import tpu as pltpu


def _layernorm(x, gamma, beta, eps=1e-5):
    # PyTorch nn.LayerNorm: biased variance over the last dim, eps inside the sqrt.
    mean = jnp.mean(x, axis=-1, keepdims=True)
    var = jnp.mean((x - mean) ** 2, axis=-1, keepdims=True)
    return (x - mean) * jax.lax.rsqrt(var + eps) * gamma + beta


def self_attention_kernel(x_ref, wv_ref, wl_ref, vec_ref, o_ref):
    x = x_ref[...].astype(jnp.float32)                      # (TB, d)

    vec = vec_ref[...].astype(jnp.float32)                  # (8, d) packed vectors
    bv = vec[0:1, :]
    bl = vec[1:2, :]
    g1 = vec[2:3, :]
    b1 = vec[3:4, :]
    g2 = vec[4:5, :]
    b2 = vec[5:6, :]

    # --- attention with sequence length 1 ---
    # softmax over a single key is exactly 1.0, so attention @ V == V projection.
    # Q/K projections and the score/softmax block are bit-exact dead code (removed).
    v = jnp.dot(x, wv_ref[...], preferred_element_type=jnp.float32) + bv

    # --- AddNorm 1 (dropout = identity in eval mode) ---
    x_norm = _layernorm(v + x, g1, b1)

    # --- Linear ---
    x_lin = jnp.dot(x_norm, wl_ref[...], preferred_element_type=jnp.float32) + bl

    # --- AddNorm 2 ---
    out = _layernorm(x_lin + x_norm, g2, b2)
    o_ref[...] = out.astype(o_ref.dtype)


def _choose_block_b(B, max_block=256):
    for tb in (max_block, 128, 64, 32, 16, 8):
        if tb <= B and B % tb == 0:
            return tb
    return B


def self_attention_forward(x, params, num_heads, block_b=None):
    B, d = x.shape
    assert d % num_heads == 0
    if block_b is None:
        block_b = _choose_block_b(B)
    assert B % block_b == 0

    # Pack all 1-row vectors into one (8, d) array: [bv, bl, g1, b1, g2, b2, 0, 0].
    vec = jnp.concatenate(
        [params["bv"], params["bl"], params["g1"], params["b1"],
         params["g2"], params["b2"],
         jnp.zeros((2, d), params["bv"].dtype)],
        axis=0,
    )

    grid = (B // block_b,)
    flops = 4 * B * d * d + 20 * B * d                       # 2 matmuls + layernorm VPU work
    bytes_accessed = 4 * (2 * B * d + 2 * d * d + 8 * d)     # fp32 activations + weights + vecs

    return pl.pallas_call(
        self_attention_kernel,
        out_shape=jax.ShapeDtypeStruct((B, d), x.dtype),
        grid=grid,
        in_specs=[
            pl.BlockSpec((block_b, d), lambda i: (i, 0)),     # x: batch-tiled
            pl.BlockSpec((d, d), lambda i: (0, 0)),           # wv_t: VMEM-resident
            pl.BlockSpec((d, d), lambda i: (0, 0)),           # wl_t: VMEM-resident
            pl.BlockSpec((8, d), lambda i: (0, 0)),           # packed vectors: resident
        ],
        out_specs=pl.BlockSpec((block_b, d), lambda i: (i, 0)),
        compiler_params=pltpu.CompilerParams(
            dimension_semantics=("parallel",)),
        cost_estimate=pl.CostEstimate(
            flops=flops, transcendentals=2 * B, bytes_accessed=bytes_accessed),
    )(x, params["wv_t"], params["wl_t"], vec)


def reference_forward(x, params, num_heads):
    """Pure-JAX reference reproducing the full PyTorch forward (eval mode),
    including the Q/K projections and the (length-1) softmax, to verify the
    dead-code elimination in the kernel is exact."""
    B, d = x.shape
    d_k = d // num_heads
    q = x @ params["wq_t"] + params["bq"][0]
    k = x @ params["wk_t"] + params["bk"][0]
    v = x @ params["wv_t"] + params["bv"][0]
    # (B, d) -> (B, 1, H, d_k) -> (B, H, 1, d_k)
    qh = q.reshape(B, 1, num_heads, d_k).transpose(0, 2, 1, 3)
    kh = k.reshape(B, 1, num_heads, d_k).transpose(0, 2, 1, 3)
    vh = v.reshape(B, 1, num_heads, d_k).transpose(0, 2, 1, 3)
    scores = jnp.matmul(qh, jnp.swapaxes(kh, -2, -1) / math.sqrt(d_k))
    attn = jax.nn.softmax(scores, axis=-1)
    av = jnp.matmul(attn, vh)                                # (B, H, 1, d_k)
    av = av.transpose(0, 2, 1, 3).reshape(B, d)

    def ln(y, g, b, eps=1e-5):
        m = jnp.mean(y, axis=-1, keepdims=True)
        vv = jnp.mean((y - m) ** 2, axis=-1, keepdims=True)
        return (y - m) / jnp.sqrt(vv + eps) * g[0] + b[0]

    x_norm = ln(av + x, params["g1"], params["b1"])
    x_lin = x_norm @ params["wl_t"] + params["bl"][0]
    return ln(x_lin + x_norm, params["g2"], params["b2"])


def init_params(key, d):
    """Deterministic init mimicking nn.Linear / nn.LayerNorm shapes."""
    ks = jax.random.split(key, 8)
    bound = 1.0 / math.sqrt(d)

    def lin(kw, kb):
        w_t = jax.random.uniform(kw, (d, d), jnp.float32, -bound, bound)  # (in, out)
        b = jax.random.uniform(kb, (1, d), jnp.float32, -bound, bound)
        return w_t, b

    wq_t, bq = lin(ks[0], ks[1])
    wk_t, bk = lin(ks[2], ks[3])
    wv_t, bv = lin(ks[4], ks[5])
    wl_t, bl = lin(ks[6], ks[7])
    return {
        "wq_t": wq_t, "bq": bq,
        "wk_t": wk_t, "bk": bk,
        "wv_t": wv_t, "bv": bv,
        "wl_t": wl_t, "bl": bl,
        "g1": jnp.ones((1, d), jnp.float32), "b1": jnp.zeros((1, d), jnp.float32),
        "g2": jnp.ones((1, d), jnp.float32), "b2": jnp.zeros((1, d), jnp.float32),
    }


if __name__ == "__main__":
    B, d, num_heads = 64, 32, 4
    key = jax.random.PRNGKey(0)
    k_x, k_p = jax.random.split(key)
    x = jax.random.normal(k_x, (B, d), jnp.float32)
    params = init_params(k_p, d)

    # block_b=16 -> grid of 4 parallel batch tiles with weights held VMEM-resident.
    out = self_attention_forward(x, params, num_heads, block_b=16)
    out = jax.block_until_ready(out)

    ref = reference_forward(x, params, num_heads)
    if not jnp.allclose(out, ref, atol=1e-4, rtol=1e-4):
        raise AssertionError("Pallas kernel does not match JAX reference")

    print("KERNEL_OK")
</pallas_src>

<mosaic_0001>
module attributes {stable_mosaic.version = 11 : i64} {
  func.func @self_attention_kernel(%arg0: i32, %arg1: memref<16x32xf32, #tpu.memory_space<vmem>>, %arg2: memref<32x32xf32, #tpu.memory_space<vmem>>, %arg3: memref<32x32xf32, #tpu.memory_space<vmem>>, %arg4: memref<8x32xf32, #tpu.memory_space<vmem>>, %arg5: memref<16x32xf32, #tpu.memory_space<vmem>>) attributes {dimension_semantics = [#tpu.dimension_semantics<parallel>], iteration_bounds = array<i64: 4>, scalar_prefetch = 0 : i64, scratch_operands = 0 : i64, tpu.core_type = #tpu.core_type<tc>, window_params = [{transform_indices = @transform_0, window_bounds = array<i64: 16, 32>}, {pipeline_mode = #tpu.pipeline_mode<synchronous>, transform_indices = @transform_1, window_bounds = array<i64: 32, 32>}, {pipeline_mode = #tpu.pipeline_mode<synchronous>, transform_indices = @transform_2, window_bounds = array<i64: 32, 32>}, {pipeline_mode = #tpu.pipeline_mode<synchronous>, transform_indices = @transform_3, window_bounds = array<i64: 8, 32>}, {transform_indices = @transform_4, window_bounds = array<i64: 16, 32>}]} {
    %c0 = arith.constant 0 : index
    %c0_0 = arith.constant 0 : index
    %0 = vector.load %arg1[%c0, %c0_0] : memref<16x32xf32, #tpu.memory_space<vmem>>, vector<16x32xf32>
    %c0_1 = arith.constant 0 : index
    %c0_2 = arith.constant 0 : index
    %1 = vector.load %arg4[%c0_1, %c0_2] : memref<8x32xf32, #tpu.memory_space<vmem>>, vector<8x32xf32>
    %2 = vector.extract_strided_slice %1 {offsets = [0, 0], sizes = [1, 32], strides = [1, 1]} : vector<8x32xf32> to vector<1x32xf32>
    %3 = vector.extract_strided_slice %1 {offsets = [1, 0], sizes = [1, 32], strides = [1, 1]} : vector<8x32xf32> to vector<1x32xf32>
    %4 = vector.extract_strided_slice %1 {offsets = [2, 0], sizes = [1, 32], strides = [1, 1]} : vector<8x32xf32> to vector<1x32xf32>
    %5 = vector.extract_strided_slice %1 {offsets = [3, 0], sizes = [1, 32], strides = [1, 1]} : vector<8x32xf32> to vector<1x32xf32>
    %6 = vector.extract_strided_slice %1 {offsets = [4, 0], sizes = [1, 32], strides = [1, 1]} : vector<8x32xf32> to vector<1x32xf32>
    %7 = vector.extract_strided_slice %1 {offsets = [5, 0], sizes = [1, 32], strides = [1, 1]} : vector<8x32xf32> to vector<1x32xf32>
    %c0_3 = arith.constant 0 : index
    %c0_4 = arith.constant 0 : index
    %8 = vector.load %arg2[%c0_3, %c0_4] : memref<32x32xf32, #tpu.memory_space<vmem>>, vector<32x32xf32>
    %cst = arith.constant dense<0.000000e+00> : vector<16x32xf32>
    %9 = tpu.matmul %0, %8, %cst {dimension_numbers = #tpu.dot_dimension_numbers<[1], [0], [0], [1], [0, 0, 1, 1], [], []>} : vector<16x32xf32>, vector<32x32xf32>, vector<16x32xf32> -> vector<16x32xf32>
    %10 = vector.broadcast %2 : vector<1x32xf32> to vector<16x32xf32>
    %11 = arith.addf %9, %10 : vector<16x32xf32>
    %12 = arith.addf %11, %0 : vector<16x32xf32>
    %cst_5 = arith.constant dense<0.000000e+00> : vector<16xf32>
    %13 = vector.multi_reduction <add>, %12, %cst_5 [1] : vector<16x32xf32> to vector<16xf32>
    %14 = vector.shape_cast %13 : vector<16xf32> to vector<16x1xf32>
    %cst_6 = arith.constant 3.200000e+01 : f32
    %15 = vector.broadcast %cst_6 : f32 to vector<16x1xf32>
    %16 = arith.divf %14, %15 : vector<16x1xf32>
    %17 = vector.broadcast %16 : vector<16x1xf32> to vector<16x32xf32>
    %18 = arith.subf %12, %17 : vector<16x32xf32>
    %19 = arith.mulf %18, %18 : vector<16x32xf32>
    %cst_7 = arith.constant dense<0.000000e+00> : vector<16xf32>
    %20 = vector.multi_reduction <add>, %19, %cst_7 [1] : vector<16x32xf32> to vector<16xf32>
    %21 = vector.shape_cast %20 : vector<16xf32> to vector<16x1xf32>
    %cst_8 = arith.constant 3.200000e+01 : f32
    %22 = vector.broadcast %cst_8 : f32 to vector<16x1xf32>
    %23 = arith.divf %21, %22 : vector<16x1xf32>
    %24 = vector.broadcast %16 : vector<16x1xf32> to vector<16x32xf32>
    %25 = arith.subf %12, %24 : vector<16x32xf32>
    %cst_9 = arith.constant 9.99999974E-6 : f32
    %26 = vector.broadcast %cst_9 : f32 to vector<16x1xf32>
    %27 = arith.addf %23, %26 : vector<16x1xf32>
    %28 = math.rsqrt %27 : vector<16x1xf32>
    %29 = vector.broadcast %28 : vector<16x1xf32> to vector<16x32xf32>
    %30 = arith.mulf %25, %29 : vector<16x32xf32>
    %31 = vector.broadcast %4 : vector<1x32xf32> to vector<16x32xf32>
    %32 = arith.mulf %30, %31 : vector<16x32xf32>
    %33 = vector.broadcast %5 : vector<1x32xf32> to vector<16x32xf32>
    %34 = arith.addf %32, %33 : vector<16x32xf32>
    %c0_10 = arith.constant 0 : index
    %c0_11 = arith.constant 0 : index
    %35 = vector.load %arg3[%c0_10, %c0_11] : memref<32x32xf32, #tpu.memory_space<vmem>>, vector<32x32xf32>
    %cst_12 = arith.constant dense<0.000000e+00> : vector<16x32xf32>
    %36 = tpu.matmul %34, %35, %cst_12 {dimension_numbers = #tpu.dot_dimension_numbers<[1], [0], [0], [1], [0, 0, 1, 1], [], []>} : vector<16x32xf32>, vector<32x32xf32>, vector<16x32xf32> -> vector<16x32xf32>
    %37 = vector.broadcast %3 : vector<1x32xf32> to vector<16x32xf32>
    %38 = arith.addf %36, %37 : vector<16x32xf32>
    %39 = arith.addf %38, %34 : vector<16x32xf32>
    %cst_13 = arith.constant dense<0.000000e+00> : vector<16xf32>
    %40 = vector.multi_reduction <add>, %39, %cst_13 [1] : vector<16x32xf32> to vector<16xf32>
    %41 = vector.shape_cast %40 : vector<16xf32> to vector<16x1xf32>
    %cst_14 = arith.constant 3.200000e+01 : f32
    %42 = vector.broadcast %cst_14 : f32 to vector<16x1xf32>
    %43 = arith.divf %41, %42 : vector<16x1xf32>
    %44 = vector.broadcast %43 : vector<16x1xf32> to vector<16x32xf32>
    %45 = arith.subf %39, %44 : vector<16x32xf32>
    %46 = arith.mulf %45, %45 : vector<16x32xf32>
    %cst_15 = arith.constant dense<0.000000e+00> : vector<16xf32>
    %47 = vector.multi_reduction <add>, %46, %cst_15 [1] : vector<16x32xf32> to vector<16xf32>
    %48 = vector.shape_cast %47 : vector<16xf32> to vector<16x1xf32>
    %cst_16 = arith.constant 3.200000e+01 : f32
    %49 = vector.broadcast %cst_16 : f32 to vector<16x1xf32>
    %50 = arith.divf %48, %49 : vector<16x1xf32>
    %51 = vector.broadcast %43 : vector<16x1xf32> to vector<16x32xf32>
    %52 = arith.subf %39, %51 : vector<16x32xf32>
    %cst_17 = arith.constant 9.99999974E-6 : f32
    %53 = vector.broadcast %cst_17 : f32 to vector<16x1xf32>
    %54 = arith.addf %50, %53 : vector<16x1xf32>
    %55 = math.rsqrt %54 : vector<16x1xf32>
    %56 = vector.broadcast %55 : vector<16x1xf32> to vector<16x32xf32>
    %57 = arith.mulf %52, %56 : vector<16x32xf32>
    %58 = vector.broadcast %6 : vector<1x32xf32> to vector<16x32xf32>
    %59 = arith.mulf %57, %58 : vector<16x32xf32>
    %60 = vector.broadcast %7 : vector<1x32xf32> to vector<16x32xf32>
    %61 = arith.addf %59, %60 : vector<16x32xf32>
    %c0_18 = arith.constant 0 : index
    %c0_19 = arith.constant 0 : index
    %62 = vector.load %arg5[%c0_18, %c0_19] : memref<16x32xf32, #tpu.memory_space<vmem>>, vector<16x32xf32>
    tpu.vector_store %arg5[%c0_18, %c0_19], %61 {strides = array<i32>} : memref<16x32xf32, #tpu.memory_space<vmem>>, vector<16x32xf32>,
    return
  }
  func.func @transform_0(%arg0: i32) -> (i32, i32) {
    %c0_i32 = arith.constant 0 : i32
    %c0_i32_0 = arith.constant 0 : i32
    return %arg0, %c0_i32 : i32, i32
  }
  func.func @transform_1(%arg0: i32) -> (i32, i32) {
    %c0_i32 = arith.constant 0 : i32
    %c0_i32_0 = arith.constant 0 : i32
    %c0_i32_1 = arith.constant 0 : i32
    return %c0_i32, %c0_i32_0 : i32, i32
  }
  func.func @transform_2(%arg0: i32) -> (i32, i32) {
    %c0_i32 = arith.constant 0 : i32
    %c0_i32_0 = arith.constant 0 : i32
    %c0_i32_1 = arith.constant 0 : i32
    return %c0_i32, %c0_i32_0 : i32, i32
  }
  func.func @transform_3(%arg0: i32) -> (i32, i32) {
    %c0_i32 = arith.constant 0 : i32
    %c0_i32_0 = arith.constant 0 : i32
    %c0_i32_1 = arith.constant 0 : i32
    return %c0_i32, %c0_i32_0 : i32, i32
  }
  func.func @transform_4(%arg0: i32) -> (i32, i32) {
    %c0_i32 = arith.constant 0 : i32
    %c0_i32_0 = arith.constant 0 : i32
    return %arg0, %c0_i32 : i32, i32
  }
}

</mosaic_0001>

<llo_original>
// kernel: tpu_custom_call.1
$region0: #{tpu_custom_call.1}
  #allocation0 [shape = 'u32[]', space=smem, size = 0x4, offset = 0x4, fixed_abs, tag = 'smem constant byte address 0x4 - core index']
  #allocation1 [shape = 'u32[144,128]{1,0:T(1,128)}', space=vmem, size = 0x12000, scoped, tag = 'internal scratch']
  %s0 = inlined_call_operand.vmem [shape: f32[64,32], index: 0, kind: input, shape index: {}]
  %s1 = inlined_call_operand.vmem [shape: f32[32,32], index: 1, kind: input, shape index: {}]
  %s2 = inlined_call_operand.vmem [shape: f32[32,32], index: 2, kind: input, shape index: {}]
  %s3 = inlined_call_operand.vmem [shape: f32[8,32], index: 3, kind: input, shape index: {}]
  %s4 = inlined_call_operand.vmem [shape: f32[64,32], index: 4, kind: output, shape index: {}]
  %s5 = sld [smem:[#allocation0]]
  $region49: #{tpu_custom_call.1} parent=0
    _
  %s7 = ssub.s32 1, %s5
  %s8 = scalar_select 0, %s7, %s5
  loop: start=0, step=1, limit=6
  $region2: #{tpu_custom_call.1} parent=0 // loop_pre_header
    _
  $region3: #{tpu_custom_call.1} parent=0 // loop_header
    %s10 = sphi 0, %s14
    %p11 = scmp.ge.s32.totalorder %s10, 6
    %s20 = sphi 0, %s22
    %s23 = sphi 0, %s20
    %s24 = sphi 0, %s23
    %s40 = sphi 0, %s24
    %s44 = sphi 0, %s44
    %s46 = sphi 0, %s44
    %s47 = sphi 0, %s46
    %s61 = sphi 0, %s47
    %s65 = sphi 0, %s65
    %s67 = sphi 0, %s65
    %s68 = sphi 0, %s67
    %s82 = sphi 0, %s68
    %s86 = sphi 0, %s86
    %s88 = sphi 0, %s86
    %s89 = sphi 0, %s88
    %s103 = sphi 0, %s89
    %s109 = sphi 0, %s111
    %s112 = sphi 0, %s109
    %s113 = sphi 0, %s112
    %s129 = sphi 0, %s113
  $region4: #{tpu_custom_call.1} parent=0 // loop_header_branch
    %13 = sbr.rel (%p11) target = $region8
  $region5: #{tpu_custom_call.1} parent=0 // loop_body
    %s15 = ssub.s32 %s10, 1
    %s16 = ssub.s32 %s10, 2
    %s17 = sadd.s32 %s10, 1
    %s18 = ssub.s32 %s10, %s17
    %p19 = scmp.eq.s32.totalorder %s18, 0
    %s21 = sadd.s32 %s20, 1
    %s22 = scalar_select %p19, %s20, %s21
    %p25 = pneg %p19
    %p26 = scmp.eq.s32.totalorder %s10, 3
    %p27 = por %p25, %p26
    %p28 = scmp.ne.s32.totalorder %s20, %s23
    %p29 = scmp.eq.s32.totalorder %s10, 0
    %p30 = por %p28, %p29
    %p31 = scmp.ne.s32.totalorder %s20, %s23
    %p32 = scmp.eq.s32.totalorder %s15, 3
    %p33 = por %p31, %p32
    %p34 = scmp.ne.s32.totalorder %s23, %s24
    %p35 = scmp.eq.s32.totalorder %s15, 0
    %p36 = por %p34, %p35
    %p37 = scmp.ne.s32.totalorder %s23, %s24
    %p38 = scmp.eq.s32.totalorder %s16, 3
    %p39 = por %p37, %p38
    %p41 = scmp.ne.s32.totalorder %s24, %s40
    %p42 = scmp.eq.s32.totalorder %s16, 0
    %p43 = por %p41, %p42
    %s45 = sadd.s32 %s44, 1
    %p48 = scmp.eq.s32.totalorder %s10, 3
    %p49 = scmp.ne.s32.totalorder %s44, %s46
    %p50 = scmp.eq.s32.totalorder %s10, 0
    %p51 = por %p49, %p50
    %p52 = scmp.ne.s32.totalorder %s44, %s46
    %p53 = scmp.eq.s32.totalorder %s15, 3
    %p54 = por %p52, %p53
    %p55 = scmp.ne.s32.totalorder %s46, %s47
    %p56 = scmp.eq.s32.totalorder %s15, 0
    %p57 = por %p55, %p56
    %p58 = scmp.ne.s32.totalorder %s46, %s47
    %p59 = scmp.eq.s32.totalorder %s16, 3
    %p60 = por %p58, %p59
    %p62 = scmp.ne.s32.totalorder %s47, %s61
    %p63 = scmp.eq.s32.totalorder %s16, 0
    %p64 = por %p62, %p63
    %s66 = sadd.s32 %s65, 1
    %p69 = scmp.eq.s32.totalorder %s10, 3
    %p70 = scmp.ne.s32.totalorder %s65, %s67
    %p71 = scmp.eq.s32.totalorder %s10, 0
    %p72 = por %p70, %p71
    %p73 = scmp.ne.s32.totalorder %s65, %s67
    %p74 = scmp.eq.s32.totalorder %s15, 3
    %p75 = por %p73, %p74
    %p76 = scmp.ne.s32.totalorder %s67, %s68
    %p77 = scmp.eq.s32.totalorder %s15, 0
    %p78 = por %p76, %p77
    %p79 = scmp.ne.s32.totalorder %s67, %s68
    %p80 = scmp.eq.s32.totalorder %s16, 3
    %p81 = por %p79, %p80
    %p83 = scmp.ne.s32.totalorder %s68, %s82
    %p84 = scmp.eq.s32.totalorder %s16, 0
    %p85 = por %p83, %p84
    %s87 = sadd.s32 %s86, 1
    %p90 = scmp.eq.s32.totalorder %s10, 3
    %p91 = scmp.ne.s32.totalorder %s86, %s88
    %p92 = scmp.eq.s32.totalorder %s10, 0
    %p93 = por %p91, %p92
    %p94 = scmp.ne.s32.totalorder %s86, %s88
    %p95 = scmp.eq.s32.totalorder %s15, 3
    %p96 = por %p94, %p95
    %p97 = scmp.ne.s32.totalorder %s88, %s89
    %p98 = scmp.eq.s32.totalorder %s15, 0
    %p99 = por %p97, %p98
    %p100 = scmp.ne.s32.totalorder %s88, %s89
    %p101 = scmp.eq.s32.totalorder %s16, 3
    %p102 = por %p100, %p101
    %p104 = scmp.ne.s32.totalorder %s89, %s103
    %p105 = scmp.eq.s32.totalorder %s16, 0
    %p106 = por %p104, %p105
    %s107 = ssub.s32 %s10, %s17
    %p108 = scmp.eq.s32.totalorder %s107, 0
    %s110 = sadd.s32 %s109, 1
    %s111 = scalar_select %p108, %s109, %s110
    %p114 = pneg %p108
    %p115 = scmp.eq.s32.totalorder %s10, 3
    %p116 = por %p114, %p115
    %p117 = scmp.ne.s32.totalorder %s109, %s112
    %p118 = scmp.eq.s32.totalorder %s10, 0
    %p119 = por %p117, %p118
    %p120 = scmp.ne.s32.totalorder %s109, %s112
    %p121 = scmp.eq.s32.totalorder %s15, 3
    %p122 = por %p120, %p121
    %p123 = scmp.ne.s32.totalorder %s112, %s113
    %p124 = scmp.eq.s32.totalorder %s15, 0
    %p125 = por %p123, %p124
    %p126 = scmp.ne.s32.totalorder %s112, %s113
    %p127 = scmp.eq.s32.totalorder %s16, 3
    %p128 = por %p126, %p127
    %p130 = scmp.ne.s32.totalorder %s113, %s129
    %p131 = scmp.eq.s32.totalorder %s16, 0
    %p132 = por %p130, %p131
    %p133 = scmp.le.s32.totalorder 1, %s10
    %p134 = scmp.lt.s32.totalorder %s10, 5
    %p135 = pnand %p133, %p134
    %p136 = pneg %p135
    // Predicated region
    $region9: #{tpu_custom_call.1} parent=5 // pred_check
      _
    $region10: #{tpu_custom_call.1} parent=5 // pred_check_branch
      %138 = sbr.rel (%p135) target = $region12
    $region11: #{tpu_custom_call.1} parent=5 // pred_region
      %s139 = ssub.s32 %s10, 1
      // Predicated region
      $region13: #{tpu_custom_call.1} parent=11 // pred_check
        %p140 = pneg %p57
      $region14: #{tpu_custom_call.1} parent=11 // pred_check_branch
        %142 = sbr.rel (%p140) target = $region16
      $region15: #{tpu_custom_call.1} parent=11 // pred_region
        _
      $region16: #{tpu_custom_call.1} parent=11 // pred_fallthru
        _
      // Predicated region
      $region17: #{tpu_custom_call.1} parent=11 // pred_check
        %p143 = pneg %p78
      $region18: #{tpu_custom_call.1} parent=11 // pred_check_branch
        %145 = sbr.rel (%p143) target = $region20
      $region19: #{tpu_custom_call.1} parent=11 // pred_region
        _
      $region20: #{tpu_custom_call.1} parent=11 // pred_fallthru
        _
      // Predicated region
      $region21: #{tpu_custom_call.1} parent=11 // pred_check
        %p146 = pneg %p99
      $region22: #{tpu_custom_call.1} parent=11 // pred_check_branch
        %148 = sbr.rel (%p146) target = $region24
      $region23: #{tpu_custom_call.1} parent=11 // pred_region
        _
      $region24: #{tpu_custom_call.1} parent=11 // pred_fallthru
        _
    $region12: #{tpu_custom_call.1} parent=5 // pred_fallthru
      _
    %p149 = scmp.lt.s32.totalorder %s10, 4
    // Predicated region
    $region25: #{tpu_custom_call.1} parent=5 // pred_check
      %p150 = pneg %p149
    $region26: #{tpu_custom_call.1} parent=5 // pred_check_branch
      %152 = sbr.rel (%p150) target = $region28
    $region27: #{tpu_custom_call.1} parent=5 // pred_region
      // Predicated region
      $region29: #{tpu_custom_call.1} parent=27 // pred_check
        %p153 = pneg %p30
      $region30: #{tpu_custom_call.1} parent=27 // pred_check_branch
        %155 = sbr.rel (%p153) target = $region32
      $region31: #{tpu_custom_call.1} parent=27 // pred_region
        %s156 = smul.u32 2, %s10
        %p157 = scmp.lt.s32.totalorder %s156, 7
        %s158 = scalar_select %p157, %s156, 7
        %s159 = smul.addr %s158, 8
        %s160 = scalar_lea.vmem %s0, %s159
        %s161 = smul.u32 2, %s10
      $region32: #{tpu_custom_call.1} parent=27 // pred_fallthru
        _
    $region28: #{tpu_custom_call.1} parent=5 // pred_fallthru
      _
    %p162 = scmp.le.s32.totalorder 1, %s10
    %p163 = scmp.lt.s32.totalorder %s10, 5
    %p164 = pnand %p162, %p163
    %p165 = pneg %p164
    // Predicated region
    $region33: #{tpu_custom_call.1} parent=5 // pred_check
      _
    $region34: #{tpu_custom_call.1} parent=5 // pred_check_branch
      %167 = sbr.rel (%p164) target = $region36
    $region35: #{tpu_custom_call.1} parent=5 // pred_region
      %s168 = ssub.s32 %s10, 1
      %s169 = smul.u32 2, %s15
      %p170 = scmp.lt.s32.totalorder %s169, 7
      %s171 = scalar_select %p170, %s169, 7
      %s172 = smul.addr %s171, 8
      %s173 = scalar_lea.vmem %s0, %s172
      %p174 = pneg %p36
      %p175 = pneg %p33
      %p176 = pneg %p57
      %p177 = pneg %p54
      %p178 = pneg %p78
      %p179 = pneg %p75
      %p180 = pneg %p99
      %p181 = pneg %p96
      %p182 = pneg %p125
      %p183 = pneg %p122
      %s184 = smul.u32 2, %s15
      %p185 = scmp.lt.s32.totalorder %s184, 7
      %s186 = scalar_select %p185, %s184, 7
      %s187 = smul.addr %s186, 8
      %s188 = scalar_lea.vmem %s4, %s187
      %s189 = smul.u32 2, %s15
      %p190 = scmp.lt.s32.totalorder %s189, 7
      %s191 = scalar_select %p190, %s189, 7
      %s192 = smul.addr %s191, 8
      %s193 = scalar_lea.vmem %s0, %s192
      %s194 = smul.u32 2, %s15
      %s195 = smul.u32 2, %s15
      %p196 = scmp.lt.s32.totalorder %s195, 7
      %s197 = scalar_select %p196, %s195, 7
      %s198 = smul.addr %s197, 8
      %s199 = scalar_lea.vmem %s4, %s198
      %s200 = smul.u32 2, %s15
      %v201 = vld [vmem:[%s193] sm:$0xff]
      %v202 = vld [vmem:[%s193 + $0x8] sm:$0xff]
      %v203 = vld [vmem:[%s3] sm:$0xff]
      %v204 = vld [vmem:[%s1] sm:$0xff]
      %v205 = vld [vmem:[%s1 + $0x8] sm:$0xff]
      %v206 = vld [vmem:[%s1 + $0x10] sm:$0xff]
      %v207 = vld [vmem:[%s1 + $0x18] sm:$0xff]
      %v208 = vlaneseq
      %v209 = vshrl.u32 %v208, 7
      %v210 = vsub.s32 0, %v209
      %v211 = vrot.slane %v203, %v210
      %vm212 = vcmask 261120
      %v214 = vsel %vm212, %v201, 0
      %v217 = vsel %vm212, %v202, 0
      %219 = vmatprep.subr.mxu0 0.0
      %220 = vmatpush1.msra.mxu0 %v204
      %221 = vmatprep.subr.mxu0 0.0
      %222 = vmatpush1.msra.mxu0 %v205
      %223 = vmatprep.subr.mxu0 0.0
      %224 = vmatpush1.msra.mxu0 %v206
      %225 = vmatprep.subr.mxu0 0.0
      %226 = vmatpush1.msra.mxu0 %v207
      %227 = vmatprep.subr.mxu0 0.0
      %228 = vmatpush1.msra.mxu0 0.0
      %229 = vmatprep.subr.mxu0 0.0
      %230 = vmatpush1.msra.mxu0 0.0
      %231 = vmatprep.subr.mxu0 0.0
      %232 = vmatpush1.msra.mxu0 0.0
      %233 = vmatprep.subr.mxu0 0.0
      %234 = vmatpush1.msra.mxu0 0.0
      %235 = vmatprep.subr.mxu0 0.0
      %236 = vmatpush1.msra.mxu0 0.0
      %237 = vmatprep.subr.mxu0 0.0
      %238 = vmatpush1.msra.mxu0 0.0
      %239 = vmatprep.subr.mxu0 0.0
      %240 = vmatpush1.msra.mxu0 0.0
      %241 = vmatprep.subr.mxu0 0.0
      %242 = vmatpush1.msra.mxu0 0.0
      %243 = vmatprep.subr.mxu0 0.0
      %244 = vmatpush1.msra.mxu0 0.0
      %245 = vmatprep.subr.mxu0 0.0
      %246 = vmatpush1.msra.mxu0 0.0
      %247 = vmatprep.subr.mxu0 0.0
      %248 = vmatpush1.msra.mxu0 0.0
      %249 = vmatprep.subr.mxu0 0.0
      %250 = vmatpush1.msra.mxu0 0.0
      %251 = vmatprep.subr.mxu0 0.0
      %252 = vmatpush1.msra.mxu0 0.0
      %253 = vmatprep.subr.mxu0 0.0
      %254 = vmatpush1.msra.mxu0 0.0
      %255 = vmatprep.subr.mxu0 0.0
      %256 = vmatpush1.msra.mxu0 0.0
      %257 = vmatprep.subr.mxu0 0.0
      %258 = vmatpush1.msra.mxu0 0.0
      %259 = vmatprep.subr.mxu0 0.0
      %260 = vmatpush1.msra.mxu0 0.0
      %261 = vmatprep.subr.mxu0 0.0
      %262 = vmatpush1.msra.mxu0 0.0
      %263 = vmatprep.subr.mxu0 0.0
      %264 = vmatpush1.msra.mxu0 0.0
      %265 = vmatprep.subr.mxu0 0.0
      %266 = vmatpush1.msra.mxu0 0.0
      %267 = vmatprep.subr.mxu0 0.0
      %268 = vmatpush1.msra.mxu0 0.0
      %269 = vmatprep.subr.mxu0 0.0
      %270 = vmatpush1.msra.mxu0 0.0
      %271 = vmatprep.subr.mxu0 0.0
      %272 = vmatpush1.msra.mxu0 0.0
      %273 = vmatprep.subr.mxu0 0.0
      %274 = vmatpush1.msra.mxu0 0.0
      %275 = vmatprep.subr.mxu0 0.0
      %276 = vmatpush1.msra.mxu0 0.0
      %277 = vmatprep.subr.mxu0 0.0
      %278 = vmatpush1.msra.mxu0 0.0
      %279 = vmatprep.subr.mxu0 0.0
      %280 = vmatpush1.msra.mxu0 0.0
      %281 = vmatprep.subr.mxu0 0.0
      %282 = vmatpush1.msra.mxu0 0.0
      %283 = vmatprep.mubr.f32.mxu0 0.0
      %284 = vmatmul.mubr.f32.gmra.mrb[0].mxu0 %v214
      %v285 = vpop.f32.mrb[0].mxu0
      %v286 = vadd.f32 %v211, %v285
      %v287 = vpop.f32.mrb[0].mxu0
      %288 = vmatprep.mubr.f32.mxu0 0.0
      %289 = vmatmul.mubr.f32.gmra.mrb[0].mxu0 %v217
      %v290 = vpop.f32.mrb[0].mxu0
      %v291 = vadd.f32 %v211, %v290
      %v292 = vpop.f32.mrb[0].mxu0
      %293 = vdwg.mxu0
      %v294 = vadd.f32 %v286, %v201
      %v295 = vadd.f32 %v291, %v202
      %v296 = vsel %vm212, %v294, 0.0
      %297 = vadd.xlane.f32.xlu0 %v296
      %v298 = vpop.xlane.xlu0 %297
      %v299 = vsel %vm212, %v295, 0.0
      %300 = vadd.xlane.f32.xlu0 %v299
      %v301 = vpop.xlane.xlu0 %300
      %v302 = vrcp.pop 32.0
      %v303 = vmul.f32 %v298, %v302
      %v304 = vmul.f32 %v301, %v302
      %v305 = vsub.f32 %v294, %v303
      %v306 = vsub.f32 %v295, %v304
      %v307 = vmul.f32 %v305, %v305
      %v308 = vmul.f32 %v306, %v306
      %v309 = vsel %vm212, %v307, 0.0
      %310 = vadd.xlane.f32.xlu0 %v309
      %v311 = vpop.xlane.xlu0 %310
      %v312 = vsel %vm212, %v308, 0.0
      %313 = vadd.xlane.f32.xlu0 %v312
      %v314 = vpop.xlane.xlu0 %313
      %v315 = vmul.f32 %v311, %v302
      %v316 = vmul.f32 %v314, %v302
      %v317 = vadd.f32 %v315, 1e-05
      %v318 = vadd.f32 %v316, 1e-05
      %v319 = vrsqrt.pop %v317
      %v320 = vrsqrt.pop %v318
      %v321 = vmul.f32 %v305, %v319
      %v322 = vmul.f32 %v306, %v320
      %v323 = vlaneseq
      %v324 = vshrl.u32 %v323, 7
      %v325 = vsub.s32 2, %v324
      %v326 = vrot.slane %v203, %v325
      %v327 = vmul.f32 %v321, %v326
      %v328 = vmul.f32 %v322, %v326
      %v329 = vlaneseq
      %v330 = vshrl.u32 %v329, 7
      %v331 = vsub.s32 3, %v330
      %v332 = vrot.slane %v203, %v331
      %v333 = vadd.f32 %v327, %v332
      %v334 = vadd.f32 %v328, %v332
      %v335 = vld [vmem:[%s2] sm:$0xff]
      %v336 = vld [vmem:[%s2 + $0x8] sm:$0xff]
      %v337 = vld [vmem:[%s2 + $0x10] sm:$0xff]
      %v338 = vld [vmem:[%s2 + $0x18] sm:$0xff]
      %v339 = vlaneseq
      %v340 = vshrl.u32 %v339, 7
      %v341 = vsub.s32 1, %v340
      %v342 = vrot.slane %v203, %v341
      %v344 = vsel %vm212, %v333, 0
      %v347 = vsel %vm212, %v334, 0
      %349 = vmatprep.subr.mxu0 0.0
      %350 = vmatpush1.msra.mxu0 %v335
      %351 = vmatprep.subr.mxu0 0.0
      %352 = vmatpush1.msra.mxu0 %v336
      %353 = vmatprep.subr.mxu0 0.0
      %354 = vmatpush1.msra.mxu0 %v337
      %355 = vmatprep.subr.mxu0 0.0
      %356 = vmatpush1.msra.mxu0 %v338
      %357 = vmatprep.subr.mxu0 0.0
      %358 = vmatpush1.msra.mxu0 0.0
      %359 = vmatprep.subr.mxu0 0.0
      %360 = vmatpush1.msra.mxu0 0.0
      %361 = vmatprep.subr.mxu0 0.0
      %362 = vmatpush1.msra.mxu0 0.0
      %363 = vmatprep.subr.mxu0 0.0
      %364 = vmatpush1.msra.mxu0 0.0
      %365 = vmatprep.subr.mxu0 0.0
      %366 = vmatpush1.msra.mxu0 0.0
      %367 = vmatprep.subr.mxu0 0.0
      %368 = vmatpush1.msra.mxu0 0.0
      %369 = vmatprep.subr.mxu0 0.0
      %370 = vmatpush1.msra.mxu0 0.0
      %371 = vmatprep.subr.mxu0 0.0
      %372 = vmatpush1.msra.mxu0 0.0
      %373 = vmatprep.subr.mxu0 0.0
      %374 = vmatpush1.msra.mxu0 0.0
      %375 = vmatprep.subr.mxu0 0.0
      %376 = vmatpush1.msra.mxu0 0.0
      %377 = vmatprep.subr.mxu0 0.0
      %378 = vmatpush1.msra.mxu0 0.0
      %379 = vmatprep.subr.mxu0 0.0
      %380 = vmatpush1.msra.mxu0 0.0
      %381 = vmatprep.subr.mxu0 0.0
      %382 = vmatpush1.msra.mxu0 0.0
      %383 = vmatprep.subr.mxu0 0.0
      %384 = vmatpush1.msra.mxu0 0.0
      %385 = vmatprep.subr.mxu0 0.0
      %386 = vmatpush1.msra.mxu0 0.0
      %387 = vmatprep.subr.mxu0 0.0
      %388 = vmatpush1.msra.mxu0 0.0
      %389 = vmatprep.subr.mxu0 0.0
      %390 = vmatpush1.msra.mxu0 0.0
      %391 = vmatprep.subr.mxu0 0.0
      %392 = vmatpush1.msra.mxu0 0.0
      %393 = vmatprep.subr.mxu0 0.0
      %394 = vmatpush1.msra.mxu0 0.0
      %395 = vmatprep.subr.mxu0 0.0
      %396 = vmatpush1.msra.mxu0 0.0
      %397 = vmatprep.subr.mxu0 0.0
      %398 = vmatpush1.msra.mxu0 0.0
      %399 = vmatprep.subr.mxu0 0.0
      %400 = vmatpush1.msra.mxu0 0.0
      %401 = vmatprep.subr.mxu0 0.0
      %402 = vmatpush1.msra.mxu0 0.0
      %403 = vmatprep.subr.mxu0 0.0
      %404 = vmatpush1.msra.mxu0 0.0
      %405 = vmatprep.subr.mxu0 0.0
      %406 = vmatpush1.msra.mxu0 0.0
      %407 = vmatprep.subr.mxu0 0.0
      %408 = vmatpush1.msra.mxu0 0.0
      %409 = vmatprep.subr.mxu0 0.0
      %410 = vmatpush1.msra.mxu0 0.0
      %411 = vmatprep.subr.mxu0 0.0
      %412 = vmatpush1.msra.mxu0 0.0
      %413 = vmatprep.mubr.f32.mxu0 0.0
      %414 = vmatmul.mubr.f32.gmra.mrb[0].mxu0 %v344
      %v415 = vpop.f32.mrb[0].mxu0
      %v416 = vadd.f32 %v342, %v415
      %v417 = vpop.f32.mrb[0].mxu0
      %418 = vmatprep.mubr.f32.mxu0 0.0
      %419 = vmatmul.mubr.f32.gmra.mrb[0].mxu0 %v347
      %v420 = vpop.f32.mrb[0].mxu0
      %v421 = vadd.f32 %v342, %v420
      %v422 = vpop.f32.mrb[0].mxu0
      %423 = vdwg.mxu0
      %v424 = vadd.f32 %v416, %v333
      %v425 = vadd.f32 %v421, %v334
      %v426 = vsel %vm212, %v424, 0.0
      %427 = vadd.xlane.f32.xlu0 %v426
      %v428 = vpop.xlane.xlu0 %427
      %v429 = vsel %vm212, %v425, 0.0
      %430 = vadd.xlane.f32.xlu0 %v429
      %v431 = vpop.xlane.xlu0 %430
      %v432 = vmul.f32 %v428, %v302
      %v433 = vmul.f32 %v431, %v302
      %v434 = vsub.f32 %v424, %v432
      %v435 = vsub.f32 %v425, %v433
      %v436 = vmul.f32 %v434, %v434
      %v437 = vmul.f32 %v435, %v435
      %v438 = vsel %vm212, %v436, 0.0
      %439 = vadd.xlane.f32.xlu0 %v438
      %v440 = vpop.xlane.xlu0 %439
      %v441 = vsel %vm212, %v437, 0.0
      %442 = vadd.xlane.f32.xlu0 %v441
      %v443 = vpop.xlane.xlu0 %442
      %v444 = vmul.f32 %v440, %v302
      %v445 = vmul.f32 %v443, %v302
      %v446 = vadd.f32 %v444, 1e-05
      %v447 = vadd.f32 %v445, 1e-05
      %v448 = vrsqrt.pop %v446
      %v449 = vrsqrt.pop %v447
      %v450 = vmul.f32 %v434, %v448
      %v451 = vmul.f32 %v435, %v449
      %v452 = vlaneseq
      %v453 = vshrl.u32 %v452, 7
      %v454 = vsub.s32 4, %v453
      %v455 = vrot.slane %v203, %v454
      %v456 = vmul.f32 %v450, %v455
      %v457 = vmul.f32 %v451, %v455
      %v458 = vlaneseq
      %v459 = vshrl.u32 %v458, 7
      %v460 = vsub.s32 5, %v459
      %v461 = vrot.slane %v203, %v460
      %v462 = vadd.f32 %v456, %v461
      %v463 = vadd.f32 %v457, %v461
      %464 = vst.msk [vmem:[%s199] sm:$0xff] %vm212, %v462
      %465 = vst.msk [vmem:[%s199 + $0x8] sm:$0xff] %vm212, %v463
      %s466 = smul.u32 2, %s15
      %p467 = scmp.lt.s32.totalorder %s466, 7
      %s468 = scalar_select %p467, %s466, 7
      %s469 = smul.addr %s468, 8
      %s470 = scalar_lea.vmem %s4, %s469
      // Predicated region
      $region37: #{tpu_custom_call.1} parent=35 // pred_check
        %p471 = pneg %p122
      $region38: #{tpu_custom_call.1} parent=35 // pred_check_branch
        %473 = sbr.rel (%p471) target = $region40
      $region39: #{tpu_custom_call.1} parent=35 // pred_region
        %s474 = smul.u32 2, %s15
      $region40: #{tpu_custom_call.1} parent=35 // pred_fallthru
        _
    $region36: #{tpu_custom_call.1} parent=5 // pred_fallthru
      _
    %p475 = scmp.le.s32.totalorder 2, %s10
    // Predicated region
    $region41: #{tpu_custom_call.1} parent=5 // pred_check
      %p476 = pneg %p475
    $region42: #{tpu_custom_call.1} parent=5 // pred_check_branch
      %478 = sbr.rel (%p476) target = $region44
    $region43: #{tpu_custom_call.1} parent=5 // pred_region
      %s479 = ssub.s32 %s10, 2
      // Predicated region
      $region45: #{tpu_custom_call.1} parent=43 // pred_check
        %p480 = pneg %p128
      $region46: #{tpu_custom_call.1} parent=43 // pred_check_branch
        %482 = sbr.rel (%p480) target = $region48
      $region47: #{tpu_custom_call.1} parent=43 // pred_region
        %s483 = smul.u32 2, %s16
        %p484 = scmp.lt.s32.totalorder %s483, 7
        %s485 = scalar_select %p484, %s483, 7
        %s486 = smul.addr %s485, 8
        %s487 = scalar_lea.vmem %s4, %s486
      $region48: #{tpu_custom_call.1} parent=43 // pred_fallthru
        _
    $region44: #{tpu_custom_call.1} parent=5 // pred_fallthru
      _
  $region6: #{tpu_custom_call.1} parent=0 // loop_footer
    %s14 = sadd.s32 1, %s10
  $region7: #{tpu_custom_call.1} parent=0 // loop_footer_branch
    %9 = sbr.rel target = $region3
  $region8: #{tpu_custom_call.1} parent=0 // loop_exit
    _

</llo_original>
